<compile_context>
chip_gen: v5e
topology: v5e:2x2
jax: 0.10.0
libtpu: 0.0.40
codegen_flags: <defaults>
</compile_context>

<pallas_src>
import jax
import jax.numpy as jnp
from jax.experimental import pallas as pl
from jax.experimental.pallas import tpu as pltpu


def svmnet_kernel(x_ref, wsvm_ref, bsvm_ref, wcls_ref, bcls_ref, seg_ref, out_ref):
    # x_ref: (TB, pack*F) f32, one packed row = `pack` consecutive samples.
    xp = x_ref[...]

    # Stage 1: pairwise OVO linear-SVM decisions (block-diagonal weights => each
    # sample only sees its own W_svm copy; zero blocks contribute exact zeros).
    dec = jnp.dot(xp, wsvm_ref[...],
                  preferred_element_type=jnp.float32,
                  precision=jax.lax.Precision.HIGHEST) + bsvm_ref[...]   # (TB, pack*P)

    # Hard pairwise prediction: torch.sign semantics (sign(0) == 0), then .float().
    feats = jnp.where(dec > 0.0, 1.0, jnp.where(dec < 0.0, -1.0, 0.0))   # (TB, pack*P)

    # Stage 2: Linear(n_pairs, n_classes), block-diagonal => per-sample logits laid
    # out as `pack` groups of C contiguous lanes.
    logits = jnp.dot(feats, wcls_ref[...],
                     preferred_element_type=jnp.float32,
                     precision=jax.lax.Precision.HIGHEST) + bcls_ref[...]  # (TB, pack*C)

    # LogSoftmax per C-wide segment, without any in-kernel reshape:
    #   subtract the packed-row max (>= every segment max, so exp() never
    #   overflows; mathematically exact for log-softmax), then broadcast the
    #   per-segment sum of exp() with a block-diagonal ones matrix on the MXU.
    m = jnp.max(logits, axis=-1, keepdims=True)                          # (TB, 1)
    shifted = logits - m
    e = jnp.exp(shifted)
    seg_sum = jnp.dot(e, seg_ref[...],
                      preferred_element_type=jnp.float32,
                      precision=jax.lax.Precision.HIGHEST)               # (TB, pack*C)
    out_ref[...] = (shifted - jnp.log(seg_sum)).astype(out_ref.dtype)


def svmnet_forward(x, w_svm, b_svm, w_cls, b_cls, *, tile_samples=131072):
    """x: (N, F) f32; w_svm: (F, P); b_svm: (1, P); w_cls: (P, C); b_cls: (1, C).

    Returns log-probabilities of shape (N, C) in f32 (matching the PyTorch module).
    """
    n, f = x.shape
    p = w_svm.shape[1]
    c = w_cls.shape[1]

    # ---- lane-dense packing: `pack` samples per 128-lane row (8 for F=16) ----
    pack = max(1, 128 // f)
    fp, pp, cp = pack * f, pack * p, pack * c

    # ---- batch tile (in packed rows); clamp to a VMEM budget safe on all gens ----
    rows = pl.cdiv(n, pack)
    tb = max(1, tile_samples // pack)
    bytes_per_packed_row = 2 * (fp + cp) * 4            # in + out, double-buffered
    vmem_budget = 24 * 1024 * 1024                       # safe on v5e/v6e/v7x
    tb = min(tb, max(8, (vmem_budget // bytes_per_packed_row) // 8 * 8))
    if tb >= rows:
        tb = rows                                        # single block == full array
        rows_pad = rows
    else:
        tb = max(8, (tb // 8) * 8)                       # sublane multiple (f32)
        rows_pad = pl.cdiv(rows, tb) * tb

    # ---- pad + pack x in f32 (no bf16 wrapper cast; stage 1 stays f32) ----
    x_f32 = x.astype(jnp.float32)
    n_pad = rows_pad * pack
    if n_pad != n:
        x_f32 = jnp.pad(x_f32, ((0, n_pad - n), (0, 0)))
    x_packed = x_f32.reshape(rows_pad, fp)

    # ---- block-diagonal replicated weights / tiled biases / segment-sum matrix ----
    eye = jnp.eye(pack, dtype=jnp.float32)
    w_svm_bd = jnp.kron(eye, w_svm.astype(jnp.float32))            # (fp, pp)
    b_svm_t = jnp.tile(b_svm.astype(jnp.float32), (1, pack))       # (1, pp)
    w_cls_bd = jnp.kron(eye, w_cls.astype(jnp.float32))            # (pp, cp)
    b_cls_t = jnp.tile(b_cls.astype(jnp.float32), (1, pack))       # (1, cp)
    seg = jnp.kron(eye, jnp.ones((c, c), dtype=jnp.float32))       # (cp, cp)

    grid = (rows_pad // tb,)

    cost = pl.CostEstimate(
        flops=int(n_pad * (2 * f * p + 2 * p * c) + rows_pad * 2 * cp * cp),
        transcendentals=int(2 * rows_pad * cp),
        bytes_accessed=int(4 * (rows_pad * (fp + cp)
                                + fp * pp + pp + pp * cp + cp + cp * cp)),
    )

    out_packed = pl.pallas_call(
        svmnet_kernel,
        out_shape=jax.ShapeDtypeStruct((rows_pad, cp), jnp.float32),
        grid=grid,
        in_specs=[
            pl.BlockSpec((tb, fp), lambda i: (i, 0)),    # x: tiled over packed rows
            pl.BlockSpec((fp, pp), lambda i: (0, 0)),    # W_svm (block-diag), resident
            pl.BlockSpec((1, pp), lambda i: (0, 0)),     # b_svm, resident
            pl.BlockSpec((pp, cp), lambda i: (0, 0)),    # W_cls (block-diag), resident
            pl.BlockSpec((1, cp), lambda i: (0, 0)),     # b_cls, resident
            pl.BlockSpec((cp, cp), lambda i: (0, 0)),    # segment-sum ones, resident
        ],
        out_specs=pl.BlockSpec((tb, cp), lambda i: (i, 0)),
        compiler_params=pltpu.CompilerParams(
            dimension_semantics=("parallel",),           # both TCs on v7x
            vmem_limit_bytes=32 * 1024 * 1024,           # raise v5e's 16 MiB default
        ),
        cost_estimate=cost,
    )(x_packed, w_svm_bd, b_svm_t, w_cls_bd, b_cls_t, seg)

    # Packed (rows_pad, pack*C) row-major bytes == (n_pad, C); slice off padding.
    return out_packed.reshape(n_pad, c)[:n]


def reference_forward(x, w_svm, b_svm, w_cls, b_cls):
    # Pure-JAX reference of the module's forward (all f32, torch.sign semantics).
    dec = jnp.dot(x, w_svm, precision=jax.lax.Precision.HIGHEST) + b_svm
    feats = jnp.sign(dec)
    logits = jnp.dot(feats, w_cls, precision=jax.lax.Precision.HIGHEST) + b_cls
    return jax.nn.log_softmax(logits, axis=1)


if __name__ == "__main__":
    # Small shapes consistent with the module:
    #   n_classes = 5 -> n_pairs = 5*4//2 = 10 ; n_features = 16 ; batch = 8
    N, F, C = 8, 16, 5
    P = C * (C - 1) // 2

    key = jax.random.PRNGKey(0)
    kx, kw1, kb1, kw2, kb2 = jax.random.split(key, 5)

    x = jax.random.normal(kx, (N, F), dtype=jnp.float32)
    # Deterministic synthetic parameters (no checkpoint load).
    w_svm = jax.random.normal(kw1, (F, P), dtype=jnp.float32) * 0.5
    b_svm = jax.random.normal(kb1, (1, P), dtype=jnp.float32) * 0.1
    # nn.Linear(P, C): weight (C, P) stored pre-transposed as (P, C), bias (C,) as (1, C).
    w_cls = jax.random.normal(kw2, (P, C), dtype=jnp.float32) * (1.0 / jnp.sqrt(P))
    b_cls = jax.random.normal(kb2, (1, C), dtype=jnp.float32) * 0.1

    out = svmnet_forward(x, w_svm, b_svm, w_cls, b_cls)
    out = jax.block_until_ready(out)

    ref = reference_forward(x, w_svm, b_svm, w_cls, b_cls)
    assert out.shape == (N, C)
    assert jnp.allclose(out, ref, atol=1e-4, rtol=1e-4), "mismatch vs reference"

    print("KERNEL_OK")
</pallas_src>

<mosaic_0001>
module attributes {stable_mosaic.version = 11 : i64} {
  func.func @svmnet_kernel(%arg0: i32, %arg1: memref<1x128xf32, #tpu.memory_space<vmem>>, %arg2: memref<128x80xf32, #tpu.memory_space<vmem>>, %arg3: memref<1x80xf32, #tpu.memory_space<vmem>>, %arg4: memref<80x40xf32, #tpu.memory_space<vmem>>, %arg5: memref<1x40xf32, #tpu.memory_space<vmem>>, %arg6: memref<40x40xf32, #tpu.memory_space<vmem>>, %arg7: memref<1x40xf32, #tpu.memory_space<vmem>>) attributes {dimension_semantics = [#tpu.dimension_semantics<parallel>], iteration_bounds = array<i64: 1>, scalar_prefetch = 0 : i64, scratch_operands = 0 : i64, tpu.core_type = #tpu.core_type<tc>, window_params = [{transform_indices = @transform_0, window_bounds = array<i64: 1, 128>}, {pipeline_mode = #tpu.pipeline_mode<synchronous>, transform_indices = @transform_1, window_bounds = array<i64: 128, 80>}, {pipeline_mode = #tpu.pipeline_mode<synchronous>, transform_indices = @transform_2, window_bounds = array<i64: 1, 80>}, {pipeline_mode = #tpu.pipeline_mode<synchronous>, transform_indices = @transform_3, window_bounds = array<i64: 80, 40>}, {pipeline_mode = #tpu.pipeline_mode<synchronous>, transform_indices = @transform_4, window_bounds = array<i64: 1, 40>}, {pipeline_mode = #tpu.pipeline_mode<synchronous>, transform_indices = @transform_5, window_bounds = array<i64: 40, 40>}, {transform_indices = @transform_6, window_bounds = array<i64: 1, 40>}]} {
    %c0 = arith.constant 0 : index
    %c0_0 = arith.constant 0 : index
    %0 = vector.load %arg1[%c0, %c0_0] : memref<1x128xf32, #tpu.memory_space<vmem>>, vector<1x128xf32>
    %c0_1 = arith.constant 0 : index
    %c0_2 = arith.constant 0 : index
    %1 = vector.load %arg2[%c0_1, %c0_2] : memref<128x80xf32, #tpu.memory_space<vmem>>, vector<128x80xf32>
    %cst = arith.constant dense<0.000000e+00> : vector<1x80xf32>
    %2 = tpu.matmul %0, %1, %cst {dimension_numbers = #tpu.dot_dimension_numbers<[1], [0], [0], [1], [0, 0, 1, 1], [], []>, precision = #tpu.contract_precision<fp32>} : vector<1x128xf32>, vector<128x80xf32>, vector<1x80xf32> -> vector<1x80xf32>
    %c0_3 = arith.constant 0 : index
    %c0_4 = arith.constant 0 : index
    %3 = vector.load %arg3[%c0_3, %c0_4] : memref<1x80xf32, #tpu.memory_space<vmem>>, vector<1x80xf32>
    %4 = arith.addf %2, %3 : vector<1x80xf32>
    %cst_5 = arith.constant 0.000000e+00 : f32
    %5 = vector.broadcast %cst_5 : f32 to vector<1x80xf32>
    %6 = arith.cmpf ogt, %4, %5 : vector<1x80xf32>
    %cst_6 = arith.constant 0.000000e+00 : f32
    %7 = vector.broadcast %cst_6 : f32 to vector<1x80xf32>
    %8 = arith.cmpf olt, %4, %7 : vector<1x80xf32>
    %cst_7 = arith.constant -1.000000e+00 : f32
    %cst_8 = arith.constant 0.000000e+00 : f32
    %9 = vector.broadcast %cst_7 : f32 to vector<1x80xf32>
    %10 = vector.broadcast %cst_8 : f32 to vector<1x80xf32>
    %11 = arith.select %8, %9, %10 : vector<1x80xi1>, vector<1x80xf32>
    %cst_9 = arith.constant 1.000000e+00 : f32
    %12 = vector.broadcast %cst_9 : f32 to vector<1x80xf32>
    %13 = arith.select %6, %12, %11 : vector<1x80xi1>, vector<1x80xf32>
    %c0_10 = arith.constant 0 : index
    %c0_11 = arith.constant 0 : index
    %14 = vector.load %arg4[%c0_10, %c0_11] : memref<80x40xf32, #tpu.memory_space<vmem>>, vector<80x40xf32>
    %cst_12 = arith.constant dense<0.000000e+00> : vector<1x40xf32>
    %15 = tpu.matmul %13, %14, %cst_12 {dimension_numbers = #tpu.dot_dimension_numbers<[1], [0], [0], [1], [0, 0, 1, 1], [], []>, precision = #tpu.contract_precision<fp32>} : vector<1x80xf32>, vector<80x40xf32>, vector<1x40xf32> -> vector<1x40xf32>
    %c0_13 = arith.constant 0 : index
    %c0_14 = arith.constant 0 : index
    %16 = vector.load %arg5[%c0_13, %c0_14] : memref<1x40xf32, #tpu.memory_space<vmem>>, vector<1x40xf32>
    %17 = arith.addf %15, %16 : vector<1x40xf32>
    %cst_15 = arith.constant dense<0xFF800000> : vector<1xf32>
    %18 = vector.multi_reduction <maximumf>, %17, %cst_15 [1] : vector<1x40xf32> to vector<1xf32>
    %19 = vector.shape_cast %18 : vector<1xf32> to vector<1x1xf32>
    %20 = vector.broadcast %19 : vector<1x1xf32> to vector<1x40xf32>
    %21 = arith.subf %17, %20 : vector<1x40xf32>
    %22 = math.exp %21 : vector<1x40xf32>
    %c0_16 = arith.constant 0 : index
    %c0_17 = arith.constant 0 : index
    %23 = vector.load %arg6[%c0_16, %c0_17] : memref<40x40xf32, #tpu.memory_space<vmem>>, vector<40x40xf32>
    %cst_18 = arith.constant dense<0.000000e+00> : vector<1x40xf32>
    %24 = tpu.matmul %22, %23, %cst_18 {dimension_numbers = #tpu.dot_dimension_numbers<[1], [0], [0], [1], [0, 0, 1, 1], [], []>, precision = #tpu.contract_precision<fp32>} : vector<1x40xf32>, vector<40x40xf32>, vector<1x40xf32> -> vector<1x40xf32>
    %25 = math.log %24 : vector<1x40xf32>
    %26 = arith.subf %21, %25 : vector<1x40xf32>
    %c0_19 = arith.constant 0 : index
    %c0_20 = arith.constant 0 : index
    %27 = vector.load %arg7[%c0_19, %c0_20] : memref<1x40xf32, #tpu.memory_space<vmem>>, vector<1x40xf32>
    tpu.vector_store %arg7[%c0_19, %c0_20], %26 {strides = array<i32>} : memref<1x40xf32, #tpu.memory_space<vmem>>, vector<1x40xf32>,
    return
  }
  func.func @transform_0(%arg0: i32) -> (i32, i32) {
    %c0_i32 = arith.constant 0 : i32
    %c0_i32_0 = arith.constant 0 : i32
    return %arg0, %c0_i32 : i32, i32
  }
  func.func @transform_1(%arg0: i32) -> (i32, i32) {
    %c0_i32 = arith.constant 0 : i32
    %c0_i32_0 = arith.constant 0 : i32
    %c0_i32_1 = arith.constant 0 : i32
    return %c0_i32, %c0_i32_0 : i32, i32
  }
  func.func @transform_2(%arg0: i32) -> (i32, i32) {
    %c0_i32 = arith.constant 0 : i32
    %c0_i32_0 = arith.constant 0 : i32
    %c0_i32_1 = arith.constant 0 : i32
    return %c0_i32, %c0_i32_0 : i32, i32
  }
  func.func @transform_3(%arg0: i32) -> (i32, i32) {
    %c0_i32 = arith.constant 0 : i32
    %c0_i32_0 = arith.constant 0 : i32
    %c0_i32_1 = arith.constant 0 : i32
    return %c0_i32, %c0_i32_0 : i32, i32
  }
  func.func @transform_4(%arg0: i32) -> (i32, i32) {
    %c0_i32 = arith.constant 0 : i32
    %c0_i32_0 = arith.constant 0 : i32
    %c0_i32_1 = arith.constant 0 : i32
    return %c0_i32, %c0_i32_0 : i32, i32
  }
  func.func @transform_5(%arg0: i32) -> (i32, i32) {
    %c0_i32 = arith.constant 0 : i32
    %c0_i32_0 = arith.constant 0 : i32
    %c0_i32_1 = arith.constant 0 : i32
    return %c0_i32, %c0_i32_0 : i32, i32
  }
  func.func @transform_6(%arg0: i32) -> (i32, i32) {
    %c0_i32 = arith.constant 0 : i32
    %c0_i32_0 = arith.constant 0 : i32
    return %arg0, %c0_i32 : i32, i32
  }
}

</mosaic_0001>

<llo_original>
// kernel: tpu_custom_call.1
$region0: #{tpu_custom_call.1}
  #allocation0 [shape = 'u32[]', space=smem, size = 0x4, offset = 0x4, fixed_abs, tag = 'smem constant byte address 0x4 - core index']
  #allocation1 [shape = 'u32[72,128]{1,0:T(1,128)}', space=vmem, size = 0x9000, scoped, tag = 'internal scratch']
  %s0 = inlined_call_operand.vmem [shape: f32[1,128], index: 0, kind: input, shape index: {}]
  %s1 = inlined_call_operand.vmem [shape: f32[128,80], index: 1, kind: input, shape index: {}]
  %s2 = inlined_call_operand.vmem [shape: f32[1,80], index: 2, kind: input, shape index: {}]
  %s3 = inlined_call_operand.vmem [shape: f32[80,40], index: 3, kind: input, shape index: {}]
  %s4 = inlined_call_operand.vmem [shape: f32[1,40], index: 4, kind: input, shape index: {}]
  %s5 = inlined_call_operand.vmem [shape: f32[40,40], index: 5, kind: input, shape index: {}]
  %s6 = inlined_call_operand.hbm [shape: f32[1,40], index: 6, kind: output, shape index: {}]
  %s7 = sld [smem:[#allocation0]]
  $region34: #{tpu_custom_call.1} parent=0
    _
  %s9 = ssub.s32 1, %s7
  %s10 = scalar_select 0, %s9, %s7
  $region1: #{tpu_custom_call.1} parent=0
    #allocation2 [shape = 'u8[512]{0}', space=vmem, size = 0x400, scoped, tag = 'output window, operand 0, single buffered']
    #allocation3 [shape = 's32[1]{0}', space=sflag, size = 0x4, scoped, tag = 'scoped memory for tpu_custom_call.1']
    %11 = vsyncpa [#allocation3], 0
    // Predicated region
    $region2: #{tpu_custom_call.1} parent=1 // pred_check
      _
    $region3: #{tpu_custom_call.1} parent=1 // pred_check_branch
      %13 = sbr.rel (0) target = $region5
    $region4: #{tpu_custom_call.1} parent=1 // pred_region
      _
    $region5: #{tpu_custom_call.1} parent=1 // pred_fallthru
      _
    // Predicated region
    $region6: #{tpu_custom_call.1} parent=1 // pred_check
      _
    $region7: #{tpu_custom_call.1} parent=1 // pred_check_branch
      %15 = sbr.rel (0) target = $region9
    $region8: #{tpu_custom_call.1} parent=1 // pred_region
      _
    $region9: #{tpu_custom_call.1} parent=1 // pred_fallthru
      _
    // Predicated region
    $region10: #{tpu_custom_call.1} parent=1 // pred_check
      _
    $region11: #{tpu_custom_call.1} parent=1 // pred_check_branch
      %17 = sbr.rel (0) target = $region13
    $region12: #{tpu_custom_call.1} parent=1 // pred_region
      _
    $region13: #{tpu_custom_call.1} parent=1 // pred_fallthru
      _
    // Predicated region
    $region14: #{tpu_custom_call.1} parent=1 // pred_check
      _
    $region15: #{tpu_custom_call.1} parent=1 // pred_check_branch
      %19 = sbr.rel (0) target = $region17
    $region16: #{tpu_custom_call.1} parent=1 // pred_region
      _
    $region17: #{tpu_custom_call.1} parent=1 // pred_fallthru
      _
    // Predicated region
    $region18: #{tpu_custom_call.1} parent=1 // pred_check
      _
    $region19: #{tpu_custom_call.1} parent=1 // pred_check_branch
      %21 = sbr.rel (0) target = $region21
    $region20: #{tpu_custom_call.1} parent=1 // pred_region
      _
    $region21: #{tpu_custom_call.1} parent=1 // pred_fallthru
      _
    // Predicated region
    $region22: #{tpu_custom_call.1} parent=1 // pred_check
      _
    $region23: #{tpu_custom_call.1} parent=1 // pred_check_branch
      %23 = sbr.rel (0) target = $region25
    $region24: #{tpu_custom_call.1} parent=1 // pred_region
      _
    $region25: #{tpu_custom_call.1} parent=1 // pred_fallthru
      _
    %v24 = vld [vmem:[%s0] sm:$0x1]
    %v25 = vld [vmem:[%s1] sm:$0xff]
    %v26 = vld [vmem:[%s1 + $0x8] sm:$0xff]
    %v27 = vld [vmem:[%s1 + $0x10] sm:$0xff]
    %v28 = vld [vmem:[%s1 + $0x18] sm:$0xff]
    %v29 = vld [vmem:[%s1 + $0x20] sm:$0xff]
    %v30 = vld [vmem:[%s1 + $0x28] sm:$0xff]
    %v31 = vld [vmem:[%s1 + $0x30] sm:$0xff]
    %v32 = vld [vmem:[%s1 + $0x38] sm:$0xff]
    %v33 = vld [vmem:[%s1 + $0x40] sm:$0xff]
    %v34 = vld [vmem:[%s1 + $0x48] sm:$0xff]
    %v35 = vld [vmem:[%s1 + $0x50] sm:$0xff]
    %v36 = vld [vmem:[%s1 + $0x58] sm:$0xff]
    %v37 = vld [vmem:[%s1 + $0x60] sm:$0xff]
    %v38 = vld [vmem:[%s1 + $0x68] sm:$0xff]
    %v39 = vld [vmem:[%s1 + $0x70] sm:$0xff]
    %v40 = vld [vmem:[%s1 + $0x78] sm:$0xff]
    %v41 = vld [vmem:[%s2] sm:$0x1]
    %v42 = vand.u32 %v40, 4294901760
    %43 = vmatpush.msra.mxu0 %v42
    %v44 = vand.u32 %v39, 4294901760
    %45 = vmatpush.msra.mxu0 %v44
    %v46 = vand.u32 %v38, 4294901760
    %47 = vmatpush.msra.mxu0 %v46
    %v48 = vand.u32 %v37, 4294901760
    %49 = vmatpush.msra.mxu0 %v48
    %v50 = vand.u32 %v36, 4294901760
    %51 = vmatpush.msra.mxu0 %v50
    %v52 = vand.u32 %v35, 4294901760
    %53 = vmatpush.msra.mxu0 %v52
    %v54 = vand.u32 %v34, 4294901760
    %55 = vmatpush.msra.mxu0 %v54
    %v56 = vand.u32 %v33, 4294901760
    %57 = vmatpush.msra.mxu0 %v56
    %v58 = vand.u32 %v32, 4294901760
    %59 = vmatpush.msra.mxu0 %v58
    %v60 = vand.u32 %v31, 4294901760
    %61 = vmatpush.msra.mxu0 %v60
    %v62 = vand.u32 %v30, 4294901760
    %63 = vmatpush.msra.mxu0 %v62
    %v64 = vand.u32 %v29, 4294901760
    %65 = vmatpush.msra.mxu0 %v64
    %v66 = vand.u32 %v28, 4294901760
    %67 = vmatpush.msra.mxu0 %v66
    %v68 = vand.u32 %v27, 4294901760
    %69 = vmatpush.msra.mxu0 %v68
    %v70 = vand.u32 %v26, 4294901760
    %71 = vmatpush.msra.mxu0 %v70
    %v72 = vand.u32 %v25, 4294901760
    %73 = vmatpush.msra.mxu0 %v72
    %v74 = vand.u32 %v24, 4294901760
    %v75 = vsub.f32 %v24, %v74
    %v76 = vand.u32 %v75, 4294901760
    %v77 = vsub.f32 %v75, %v76
    %v78 = vand.u32 %v77, 4294901760
    %79 = vmatmul.f32.gmra.mxu0 %v78
    %v80 = vpop.f32.mrf.mxu0
    %v81 = vadd.f32 %v41, %v80
    %82 = vdwg.mxu0
    %v83 = vand.u32 %v40, 4294901760
    %v84 = vsub.f32 %v40, %v83
    %v85 = vand.u32 %v84, 4294901760
    %v86 = vsub.f32 %v84, %v85
    %v87 = vand.u32 %v86, 4294901760
    %88 = vmatpush.msra.mxu0 %v87
    %v89 = vand.u32 %v39, 4294901760
    %v90 = vsub.f32 %v39, %v89
    %v91 = vand.u32 %v90, 4294901760
    %v92 = vsub.f32 %v90, %v91
    %v93 = vand.u32 %v92, 4294901760
    %94 = vmatpush.msra.mxu0 %v93
    %v95 = vand.u32 %v38, 4294901760
    %v96 = vsub.f32 %v38, %v95
    %v97 = vand.u32 %v96, 4294901760
    %v98 = vsub.f32 %v96, %v97
    %v99 = vand.u32 %v98, 4294901760
    %100 = vmatpush.msra.mxu0 %v99
    %v101 = vand.u32 %v37, 4294901760
    %v102 = vsub.f32 %v37, %v101
    %v103 = vand.u32 %v102, 4294901760
    %v104 = vsub.f32 %v102, %v103
    %v105 = vand.u32 %v104, 4294901760
    %106 = vmatpush.msra.mxu0 %v105
    %v107 = vand.u32 %v36, 4294901760
    %v108 = vsub.f32 %v36, %v107
    %v109 = vand.u32 %v108, 4294901760
    %v110 = vsub.f32 %v108, %v109
    %v111 = vand.u32 %v110, 4294901760
    %112 = vmatpush.msra.mxu0 %v111
    %v113 = vand.u32 %v35, 4294901760
    %v114 = vsub.f32 %v35, %v113
    %v115 = vand.u32 %v114, 4294901760
    %v116 = vsub.f32 %v114, %v115
    %v117 = vand.u32 %v116, 4294901760
    %118 = vmatpush.msra.mxu0 %v117
    %v119 = vand.u32 %v34, 4294901760
    %v120 = vsub.f32 %v34, %v119
    %v121 = vand.u32 %v120, 4294901760
    %v122 = vsub.f32 %v120, %v121
    %v123 = vand.u32 %v122, 4294901760
    %124 = vmatpush.msra.mxu0 %v123
    %v125 = vand.u32 %v33, 4294901760
    %v126 = vsub.f32 %v33, %v125
    %v127 = vand.u32 %v126, 4294901760
    %v128 = vsub.f32 %v126, %v127
    %v129 = vand.u32 %v128, 4294901760
    %130 = vmatpush.msra.mxu0 %v129
    %v131 = vand.u32 %v32, 4294901760
    %v132 = vsub.f32 %v32, %v131
    %v133 = vand.u32 %v132, 4294901760
    %v134 = vsub.f32 %v132, %v133
    %v135 = vand.u32 %v134, 4294901760
    %136 = vmatpush.msra.mxu0 %v135
    %v137 = vand.u32 %v31, 4294901760
    %v138 = vsub.f32 %v31, %v137
    %v139 = vand.u32 %v138, 4294901760
    %v140 = vsub.f32 %v138, %v139
    %v141 = vand.u32 %v140, 4294901760
    %142 = vmatpush.msra.mxu0 %v141
    %v143 = vand.u32 %v30, 4294901760
    %v144 = vsub.f32 %v30, %v143
    %v145 = vand.u32 %v144, 4294901760
    %v146 = vsub.f32 %v144, %v145
    %v147 = vand.u32 %v146, 4294901760
    %148 = vmatpush.msra.mxu0 %v147
    %v149 = vand.u32 %v29, 4294901760
    %v150 = vsub.f32 %v29, %v149
    %v151 = vand.u32 %v150, 4294901760
    %v152 = vsub.f32 %v150, %v151
    %v153 = vand.u32 %v152, 4294901760
    %154 = vmatpush.msra.mxu0 %v153
    %v155 = vand.u32 %v28, 4294901760
    %v156 = vsub.f32 %v28, %v155
    %v157 = vand.u32 %v156, 4294901760
    %v158 = vsub.f32 %v156, %v157
    %v159 = vand.u32 %v158, 4294901760
    %160 = vmatpush.msra.mxu0 %v159
    %v161 = vand.u32 %v27, 4294901760
    %v162 = vsub.f32 %v27, %v161
    %v163 = vand.u32 %v162, 4294901760
    %v164 = vsub.f32 %v162, %v163
    %v165 = vand.u32 %v164, 4294901760
    %166 = vmatpush.msra.mxu0 %v165
    %v167 = vand.u32 %v26, 4294901760
    %v168 = vsub.f32 %v26, %v167
    %v169 = vand.u32 %v168, 4294901760
    %v170 = vsub.f32 %v168, %v169
    %v171 = vand.u32 %v170, 4294901760
    %172 = vmatpush.msra.mxu0 %v171
    %v173 = vand.u32 %v25, 4294901760
    %v174 = vsub.f32 %v25, %v173
    %v175 = vand.u32 %v174, 4294901760
    %v176 = vsub.f32 %v174, %v175
    %v177 = vand.u32 %v176, 4294901760
    %178 = vmatpush.msra.mxu0 %v177
    %v179 = vand.u32 %v24, 4294901760
    %180 = vmatmul.f32.gmra.mxu0 %v179
    %v181 = vpop.f32.mrf.mxu0
    %v182 = vadd.f32 %v81, %v181
    %183 = vdwg.mxu0
    %v184 = vand.u32 %v40, 4294901760
    %v185 = vsub.f32 %v40, %v184
    %186 = vmatpush.msra.mxu0 %v185
    %v187 = vand.u32 %v39, 4294901760
    %v188 = vsub.f32 %v39, %v187
    %189 = vmatpush.msra.mxu0 %v188
    %v190 = vand.u32 %v38, 4294901760
    %v191 = vsub.f32 %v38, %v190
    %192 = vmatpush.msra.mxu0 %v191
    %v193 = vand.u32 %v37, 4294901760
    %v194 = vsub.f32 %v37, %v193
    %195 = vmatpush.msra.mxu0 %v194
    %v196 = vand.u32 %v36, 4294901760
    %v197 = vsub.f32 %v36, %v196
    %198 = vmatpush.msra.mxu0 %v197
    %v199 = vand.u32 %v35, 4294901760
    %v200 = vsub.f32 %v35, %v199
    %201 = vmatpush.msra.mxu0 %v200
    %v202 = vand.u32 %v34, 4294901760
    %v203 = vsub.f32 %v34, %v202
    %204 = vmatpush.msra.mxu0 %v203
    %v205 = vand.u32 %v33, 4294901760
    %v206 = vsub.f32 %v33, %v205
    %207 = vmatpush.msra.mxu0 %v206
    %v208 = vand.u32 %v32, 4294901760
    %v209 = vsub.f32 %v32, %v208
    %210 = vmatpush.msra.mxu0 %v209
    %v211 = vand.u32 %v31, 4294901760
    %v212 = vsub.f32 %v31, %v211
    %213 = vmatpush.msra.mxu0 %v212
    %v214 = vand.u32 %v30, 4294901760
    %v215 = vsub.f32 %v30, %v214
    %216 = vmatpush.msra.mxu0 %v215
    %v217 = vand.u32 %v29, 4294901760
    %v218 = vsub.f32 %v29, %v217
    %219 = vmatpush.msra.mxu0 %v218
    %v220 = vand.u32 %v28, 4294901760
    %v221 = vsub.f32 %v28, %v220
    %222 = vmatpush.msra.mxu0 %v221
    %v223 = vand.u32 %v27, 4294901760
    %v224 = vsub.f32 %v27, %v223
    %225 = vmatpush.msra.mxu0 %v224
    %v226 = vand.u32 %v26, 4294901760
    %v227 = vsub.f32 %v26, %v226
    %228 = vmatpush.msra.mxu0 %v227
    %v229 = vand.u32 %v25, 4294901760
    %v230 = vsub.f32 %v25, %v229
    %231 = vmatpush.msra.mxu0 %v230
    %v232 = vand.u32 %v24, 4294901760
    %v233 = vsub.f32 %v24, %v232
    %234 = vmatmul.f32.gmra.mxu0 %v233
    %v235 = vpop.f32.mrf.mxu0
    %v236 = vadd.f32 %v182, %v235
    %237 = vdwg.mxu0
    %v238 = vand.u32 %v40, 4294901760
    %239 = vmatpush.msra.mxu0 %v238
    %v240 = vand.u32 %v39, 4294901760
    %241 = vmatpush.msra.mxu0 %v240
    %v242 = vand.u32 %v38, 4294901760
    %243 = vmatpush.msra.mxu0 %v242
    %v244 = vand.u32 %v37, 4294901760
    %245 = vmatpush.msra.mxu0 %v244
    %v246 = vand.u32 %v36, 4294901760
    %247 = vmatpush.msra.mxu0 %v246
    %v248 = vand.u32 %v35, 4294901760
    %249 = vmatpush.msra.mxu0 %v248
    %v250 = vand.u32 %v34, 4294901760
    %251 = vmatpush.msra.mxu0 %v250
    %v252 = vand.u32 %v33, 4294901760
    %253 = vmatpush.msra.mxu0 %v252
    %v254 = vand.u32 %v32, 4294901760
    %255 = vmatpush.msra.mxu0 %v254
    %v256 = vand.u32 %v31, 4294901760
    %257 = vmatpush.msra.mxu0 %v256
    %v258 = vand.u32 %v30, 4294901760
    %259 = vmatpush.msra.mxu0 %v258
    %v260 = vand.u32 %v29, 4294901760
    %261 = vmatpush.msra.mxu0 %v260
    %v262 = vand.u32 %v28, 4294901760
    %263 = vmatpush.msra.mxu0 %v262
    %v264 = vand.u32 %v27, 4294901760
    %265 = vmatpush.msra.mxu0 %v264
    %v266 = vand.u32 %v26, 4294901760
    %267 = vmatpush.msra.mxu0 %v266
    %v268 = vand.u32 %v25, 4294901760
    %269 = vmatpush.msra.mxu0 %v268
    %v270 = vand.u32 %v24, 4294901760
    %v271 = vsub.f32 %v24, %v270
    %v272 = vand.u32 %v271, 4294901760
    %273 = vmatmul.f32.gmra.mxu0 %v272
    %v274 = vpop.f32.mrf.mxu0
    %v275 = vadd.f32 %v236, %v274
    %276 = vdwg.mxu0
    %v277 = vand.u32 %v40, 4294901760
    %v278 = vsub.f32 %v40, %v277
    %v279 = vand.u32 %v278, 4294901760
    %280 = vmatpush.msra.mxu0 %v279
    %v281 = vand.u32 %v39, 4294901760
    %v282 = vsub.f32 %v39, %v281
    %v283 = vand.u32 %v282, 4294901760
    %284 = vmatpush.msra.mxu0 %v283
    %v285 = vand.u32 %v38, 4294901760
    %v286 = vsub.f32 %v38, %v285
    %v287 = vand.u32 %v286, 4294901760
    %288 = vmatpush.msra.mxu0 %v287
    %v289 = vand.u32 %v37, 4294901760
    %v290 = vsub.f32 %v37, %v289
    %v291 = vand.u32 %v290, 4294901760
    %292 = vmatpush.msra.mxu0 %v291
    %v293 = vand.u32 %v36, 4294901760
    %v294 = vsub.f32 %v36, %v293
    %v295 = vand.u32 %v294, 4294901760
    %296 = vmatpush.msra.mxu0 %v295
    %v297 = vand.u32 %v35, 4294901760
    %v298 = vsub.f32 %v35, %v297
    %v299 = vand.u32 %v298, 4294901760
    %300 = vmatpush.msra.mxu0 %v299
    %v301 = vand.u32 %v34, 4294901760
    %v302 = vsub.f32 %v34, %v301
    %v303 = vand.u32 %v302, 4294901760
    %304 = vmatpush.msra.mxu0 %v303
    %v305 = vand.u32 %v33, 4294901760
    %v306 = vsub.f32 %v33, %v305
    %v307 = vand.u32 %v306, 4294901760
    %308 = vmatpush.msra.mxu0 %v307
    %v309 = vand.u32 %v32, 4294901760
    %v310 = vsub.f32 %v32, %v309
    %v311 = vand.u32 %v310, 4294901760
    %312 = vmatpush.msra.mxu0 %v311
    %v313 = vand.u32 %v31, 4294901760
    %v314 = vsub.f32 %v31, %v313
    %v315 = vand.u32 %v314, 4294901760
    %316 = vmatpush.msra.mxu0 %v315
    %v317 = vand.u32 %v30, 4294901760
    %v318 = vsub.f32 %v30, %v317
    %v319 = vand.u32 %v318, 4294901760
    %320 = vmatpush.msra.mxu0 %v319
    %v321 = vand.u32 %v29, 4294901760
    %v322 = vsub.f32 %v29, %v321
    %v323 = vand.u32 %v322, 4294901760
    %324 = vmatpush.msra.mxu0 %v323
    %v325 = vand.u32 %v28, 4294901760
    %v326 = vsub.f32 %v28, %v325
    %v327 = vand.u32 %v326, 4294901760
    %328 = vmatpush.msra.mxu0 %v327
    %v329 = vand.u32 %v27, 4294901760
    %v330 = vsub.f32 %v27, %v329
    %v331 = vand.u32 %v330, 4294901760
    %332 = vmatpush.msra.mxu0 %v331
    %v333 = vand.u32 %v26, 4294901760
    %v334 = vsub.f32 %v26, %v333
    %v335 = vand.u32 %v334, 4294901760
    %336 = vmatpush.msra.mxu0 %v335
    %v337 = vand.u32 %v25, 4294901760
    %v338 = vsub.f32 %v25, %v337
    %v339 = vand.u32 %v338, 4294901760
    %340 = vmatpush.msra.mxu0 %v339
    %v341 = vand.u32 %v24, 4294901760
    %342 = vmatmul.f32.gmra.mxu0 %v341
    %v343 = vpop.f32.mrf.mxu0
    %v344 = vadd.f32 %v275, %v343
    %345 = vdwg.mxu0
    %v346 = vand.u32 %v40, 4294901760
    %347 = vmatpush.msra.mxu0 %v346
    %v348 = vand.u32 %v39, 4294901760
    %349 = vmatpush.msra.mxu0 %v348
    %v350 = vand.u32 %v38, 4294901760
    %351 = vmatpush.msra.mxu0 %v350
    %v352 = vand.u32 %v37, 4294901760
    %353 = vmatpush.msra.mxu0 %v352
    %v354 = vand.u32 %v36, 4294901760
    %355 = vmatpush.msra.mxu0 %v354
    %v356 = vand.u32 %v35, 4294901760
    %357 = vmatpush.msra.mxu0 %v356
    %v358 = vand.u32 %v34, 4294901760
    %359 = vmatpush.msra.mxu0 %v358
    %v360 = vand.u32 %v33, 4294901760
    %361 = vmatpush.msra.mxu0 %v360
    %v362 = vand.u32 %v32, 4294901760
    %363 = vmatpush.msra.mxu0 %v362
    %v364 = vand.u32 %v31, 4294901760
    %365 = vmatpush.msra.mxu0 %v364
    %v366 = vand.u32 %v30, 4294901760
    %367 = vmatpush.msra.mxu0 %v366
    %v368 = vand.u32 %v29, 4294901760
    %369 = vmatpush.msra.mxu0 %v368
    %v370 = vand.u32 %v28, 4294901760
    %371 = vmatpush.msra.mxu0 %v370
    %v372 = vand.u32 %v27, 4294901760
    %373 = vmatpush.msra.mxu0 %v372
    %v374 = vand.u32 %v26, 4294901760
    %375 = vmatpush.msra.mxu0 %v374
    %v376 = vand.u32 %v25, 4294901760
    %377 = vmatpush.msra.mxu0 %v376
    %v378 = vand.u32 %v24, 4294901760
    %379 = vmatmul.f32.gmra.mxu0 %v378
    %v380 = vpop.f32.mrf.mxu0
    %v381 = vadd.f32 %v344, %v380
    %382 = vdwg.mxu0
    %vm383 = vcmp.gt.f32.partialorder %v381, 0.0
    %vm384 = vcmp.lt.f32.partialorder %v381, 0.0
    %v385 = vsel %vm384, -1.0, 0.0
    %v386 = vsel %vm383, 1.0, %v385
    %v387 = vld [vmem:[%s3] sm:$0xff]
    %v388 = vld [vmem:[%s3 + $0x8] sm:$0xff]
    %v389 = vld [vmem:[%s3 + $0x10] sm:$0xff]
    %v390 = vld [vmem:[%s3 + $0x18] sm:$0xff]
    %v391 = vld [vmem:[%s3 + $0x20] sm:$0xff]
    %v392 = vld [vmem:[%s3 + $0x28] sm:$0xff]
    %v393 = vld [vmem:[%s3 + $0x30] sm:$0xff]
    %v394 = vld [vmem:[%s3 + $0x38] sm:$0xff]
    %v395 = vld [vmem:[%s3 + $0x40] sm:$0xff]
    %v396 = vld [vmem:[%s3 + $0x48] sm:$0xff]
    %v397 = vld [vmem:[%s4] sm:$0x1]
    %vm398 = vcmask 654336
    %v400 = vsel %vm398, %v386, 0
    %402 = vmatpush.msra.mxu0 0.0
    %403 = vmatpush.msra.mxu0 0.0
    %404 = vmatpush.msra.mxu0 0.0
    %405 = vmatpush.msra.mxu0 0.0
    %406 = vmatpush.msra.mxu0 0.0
    %407 = vmatpush.msra.mxu0 0.0
    %v408 = vand.u32 %v396, 4294901760
    %409 = vmatpush.msra.mxu0 %v408
    %v410 = vand.u32 %v395, 4294901760
    %411 = vmatpush.msra.mxu0 %v410
    %v412 = vand.u32 %v394, 4294901760
    %413 = vmatpush.msra.mxu0 %v412
    %v414 = vand.u32 %v393, 4294901760
    %415 = vmatpush.msra.mxu0 %v414
    %v416 = vand.u32 %v392, 4294901760
    %417 = vmatpush.msra.mxu0 %v416
    %v418 = vand.u32 %v391, 4294901760
    %419 = vmatpush.msra.mxu0 %v418
    %v420 = vand.u32 %v390, 4294901760
    %421 = vmatpush.msra.mxu0 %v420
    %v422 = vand.u32 %v389, 4294901760
    %423 = vmatpush.msra.mxu0 %v422
    %v424 = vand.u32 %v388, 4294901760
    %425 = vmatpush.msra.mxu0 %v424
    %v426 = vand.u32 %v387, 4294901760
    %427 = vmatpush.msra.mxu0 %v426
    %v428 = vand.u32 %v400, 4294901760
    %v429 = vsub.f32 %v400, %v428
    %v430 = vand.u32 %v429, 4294901760
    %v431 = vsub.f32 %v429, %v430
    %v432 = vand.u32 %v431, 4294901760
    %433 = vmatmul.f32.gmra.mxu0 %v432
    %v434 = vpop.f32.mrf.mxu0
    %v435 = vadd.f32 %v397, %v434
    %436 = vdwg.mxu0
    %437 = vmatpush.msra.mxu0 0.0
    %438 = vmatpush.msra.mxu0 0.0
    %439 = vmatpush.msra.mxu0 0.0
    %440 = vmatpush.msra.mxu0 0.0
    %441 = vmatpush.msra.mxu0 0.0
    %442 = vmatpush.msra.mxu0 0.0
    %v443 = vand.u32 %v396, 4294901760
    %v444 = vsub.f32 %v396, %v443
    %v445 = vand.u32 %v444, 4294901760
    %v446 = vsub.f32 %v444, %v445
    %v447 = vand.u32 %v446, 4294901760
    %448 = vmatpush.msra.mxu0 %v447
    %v449 = vand.u32 %v395, 4294901760
    %v450 = vsub.f32 %v395, %v449
    %v451 = vand.u32 %v450, 4294901760
    %v452 = vsub.f32 %v450, %v451
    %v453 = vand.u32 %v452, 4294901760
    %454 = vmatpush.msra.mxu0 %v453
    %v455 = vand.u32 %v394, 4294901760
    %v456 = vsub.f32 %v394, %v455
    %v457 = vand.u32 %v456, 4294901760
    %v458 = vsub.f32 %v456, %v457
    %v459 = vand.u32 %v458, 4294901760
    %460 = vmatpush.msra.mxu0 %v459
    %v461 = vand.u32 %v393, 4294901760
    %v462 = vsub.f32 %v393, %v461
    %v463 = vand.u32 %v462, 4294901760
    %v464 = vsub.f32 %v462, %v463
    %v465 = vand.u32 %v464, 4294901760
    %466 = vmatpush.msra.mxu0 %v465
    %v467 = vand.u32 %v392, 4294901760
    %v468 = vsub.f32 %v392, %v467
    %v469 = vand.u32 %v468, 4294901760
    %v470 = vsub.f32 %v468, %v469
    %v471 = vand.u32 %v470, 4294901760
    %472 = vmatpush.msra.mxu0 %v471
    %v473 = vand.u32 %v391, 4294901760
    %v474 = vsub.f32 %v391, %v473
    %v475 = vand.u32 %v474, 4294901760
    %v476 = vsub.f32 %v474, %v475
    %v477 = vand.u32 %v476, 4294901760
    %478 = vmatpush.msra.mxu0 %v477
    %v479 = vand.u32 %v390, 4294901760
    %v480 = vsub.f32 %v390, %v479
    %v481 = vand.u32 %v480, 4294901760
    %v482 = vsub.f32 %v480, %v481
    %v483 = vand.u32 %v482, 4294901760
    %484 = vmatpush.msra.mxu0 %v483
    %v485 = vand.u32 %v389, 4294901760
    %v486 = vsub.f32 %v389, %v485
    %v487 = vand.u32 %v486, 4294901760
    %v488 = vsub.f32 %v486, %v487
    %v489 = vand.u32 %v488, 4294901760
    %490 = vmatpush.msra.mxu0 %v489
    %v491 = vand.u32 %v388, 4294901760
    %v492 = vsub.f32 %v388, %v491
    %v493 = vand.u32 %v492, 4294901760
    %v494 = vsub.f32 %v492, %v493
    %v495 = vand.u32 %v494, 4294901760
    %496 = vmatpush.msra.mxu0 %v495
    %v497 = vand.u32 %v387, 4294901760
    %v498 = vsub.f32 %v387, %v497
    %v499 = vand.u32 %v498, 4294901760
    %v500 = vsub.f32 %v498, %v499
    %v501 = vand.u32 %v500, 4294901760
    %502 = vmatpush.msra.mxu0 %v501
    %v503 = vand.u32 %v400, 4294901760
    %504 = vmatmul.f32.gmra.mxu0 %v503
    %v505 = vpop.f32.mrf.mxu0
    %v506 = vadd.f32 %v435, %v505
    %507 = vdwg.mxu0
    %508 = vmatpush.msra.mxu0 0.0
    %509 = vmatpush.msra.mxu0 0.0
    %510 = vmatpush.msra.mxu0 0.0
    %511 = vmatpush.msra.mxu0 0.0
    %512 = vmatpush.msra.mxu0 0.0
    %513 = vmatpush.msra.mxu0 0.0
    %v514 = vand.u32 %v396, 4294901760
    %v515 = vsub.f32 %v396, %v514
    %516 = vmatpush.msra.mxu0 %v515
    %v517 = vand.u32 %v395, 4294901760
    %v518 = vsub.f32 %v395, %v517
    %519 = vmatpush.msra.mxu0 %v518
    %v520 = vand.u32 %v394, 4294901760
    %v521 = vsub.f32 %v394, %v520
    %522 = vmatpush.msra.mxu0 %v521
    %v523 = vand.u32 %v393, 4294901760
    %v524 = vsub.f32 %v393, %v523
    %525 = vmatpush.msra.mxu0 %v524
    %v526 = vand.u32 %v392, 4294901760
    %v527 = vsub.f32 %v392, %v526
    %528 = vmatpush.msra.mxu0 %v527
    %v529 = vand.u32 %v391, 4294901760
    %v530 = vsub.f32 %v391, %v529
    %531 = vmatpush.msra.mxu0 %v530
    %v532 = vand.u32 %v390, 4294901760
    %v533 = vsub.f32 %v390, %v532
    %534 = vmatpush.msra.mxu0 %v533
    %v535 = vand.u32 %v389, 4294901760
    %v536 = vsub.f32 %v389, %v535
    %537 = vmatpush.msra.mxu0 %v536
    %v538 = vand.u32 %v388, 4294901760
    %v539 = vsub.f32 %v388, %v538
    %540 = vmatpush.msra.mxu0 %v539
    %v541 = vand.u32 %v387, 4294901760
    %v542 = vsub.f32 %v387, %v541
    %543 = vmatpush.msra.mxu0 %v542
    %v544 = vand.u32 %v400, 4294901760
    %v545 = vsub.f32 %v400, %v544
    %546 = vmatmul.f32.gmra.mxu0 %v545
    %v547 = vpop.f32.mrf.mxu0
    %v548 = vadd.f32 %v506, %v547
    %549 = vdwg.mxu0
    %550 = vmatpush.msra.mxu0 0.0
    %551 = vmatpush.msra.mxu0 0.0
    %552 = vmatpush.msra.mxu0 0.0
    %553 = vmatpush.msra.mxu0 0.0
    %554 = vmatpush.msra.mxu0 0.0
    %555 = vmatpush.msra.mxu0 0.0
    %v556 = vand.u32 %v396, 4294901760
    %557 = vmatpush.msra.mxu0 %v556
    %v558 = vand.u32 %v395, 4294901760
    %559 = vmatpush.msra.mxu0 %v558
    %v560 = vand.u32 %v394, 4294901760
    %561 = vmatpush.msra.mxu0 %v560
    %v562 = vand.u32 %v393, 4294901760
    %563 = vmatpush.msra.mxu0 %v562
    %v564 = vand.u32 %v392, 4294901760
    %565 = vmatpush.msra.mxu0 %v564
    %v566 = vand.u32 %v391, 4294901760
    %567 = vmatpush.msra.mxu0 %v566
    %v568 = vand.u32 %v390, 4294901760
    %569 = vmatpush.msra.mxu0 %v568
    %v570 = vand.u32 %v389, 4294901760
    %571 = vmatpush.msra.mxu0 %v570
    %v572 = vand.u32 %v388, 4294901760
    %573 = vmatpush.msra.mxu0 %v572
    %v574 = vand.u32 %v387, 4294901760
    %575 = vmatpush.msra.mxu0 %v574
    %v576 = vand.u32 %v400, 4294901760
    %v577 = vsub.f32 %v400, %v576
    %v578 = vand.u32 %v577, 4294901760
    %579 = vmatmul.f32.gmra.mxu0 %v578
    %v580 = vpop.f32.mrf.mxu0
    %v581 = vadd.f32 %v548, %v580
    %582 = vdwg.mxu0
    %583 = vmatpush.msra.mxu0 0.0
    %584 = vmatpush.msra.mxu0 0.0
    %585 = vmatpush.msra.mxu0 0.0
    %586 = vmatpush.msra.mxu0 0.0
    %587 = vmatpush.msra.mxu0 0.0
    %588 = vmatpush.msra.mxu0 0.0
    %v589 = vand.u32 %v396, 4294901760
    %v590 = vsub.f32 %v396, %v589
    %v591 = vand.u32 %v590, 4294901760
    %592 = vmatpush.msra.mxu0 %v591
    %v593 = vand.u32 %v395, 4294901760
    %v594 = vsub.f32 %v395, %v593
    %v595 = vand.u32 %v594, 4294901760
    %596 = vmatpush.msra.mxu0 %v595
    %v597 = vand.u32 %v394, 4294901760
    %v598 = vsub.f32 %v394, %v597
    %v599 = vand.u32 %v598, 4294901760
    %600 = vmatpush.msra.mxu0 %v599
    %v601 = vand.u32 %v393, 4294901760
    %v602 = vsub.f32 %v393, %v601
    %v603 = vand.u32 %v602, 4294901760
    %604 = vmatpush.msra.mxu0 %v603
    %v605 = vand.u32 %v392, 4294901760
    %v606 = vsub.f32 %v392, %v605
    %v607 = vand.u32 %v606, 4294901760
    %608 = vmatpush.msra.mxu0 %v607
    %v609 = vand.u32 %v391, 4294901760
    %v610 = vsub.f32 %v391, %v609
    %v611 = vand.u32 %v610, 4294901760
    %612 = vmatpush.msra.mxu0 %v611
    %v613 = vand.u32 %v390, 4294901760
    %v614 = vsub.f32 %v390, %v613
    %v615 = vand.u32 %v614, 4294901760
    %616 = vmatpush.msra.mxu0 %v615
    %v617 = vand.u32 %v389, 4294901760
    %v618 = vsub.f32 %v389, %v617
    %v619 = vand.u32 %v618, 4294901760
    %620 = vmatpush.msra.mxu0 %v619
    %v621 = vand.u32 %v388, 4294901760
    %v622 = vsub.f32 %v388, %v621
    %v623 = vand.u32 %v622, 4294901760
    %624 = vmatpush.msra.mxu0 %v623
    %v625 = vand.u32 %v387, 4294901760
    %v626 = vsub.f32 %v387, %v625
    %v627 = vand.u32 %v626, 4294901760
    %628 = vmatpush.msra.mxu0 %v627
    %v629 = vand.u32 %v400, 4294901760
    %630 = vmatmul.f32.gmra.mxu0 %v629
    %v631 = vpop.f32.mrf.mxu0
    %v632 = vadd.f32 %v581, %v631
    %633 = vdwg.mxu0
    %634 = vmatpush.msra.mxu0 0.0
    %635 = vmatpush.msra.mxu0 0.0
    %636 = vmatpush.msra.mxu0 0.0
    %637 = vmatpush.msra.mxu0 0.0
    %638 = vmatpush.msra.mxu0 0.0
    %639 = vmatpush.msra.mxu0 0.0
    %v640 = vand.u32 %v396, 4294901760
    %641 = vmatpush.msra.mxu0 %v640
    %v642 = vand.u32 %v395, 4294901760
    %643 = vmatpush.msra.mxu0 %v642
    %v644 = vand.u32 %v394, 4294901760
    %645 = vmatpush.msra.mxu0 %v644
    %v646 = vand.u32 %v393, 4294901760
    %647 = vmatpush.msra.mxu0 %v646
    %v648 = vand.u32 %v392, 4294901760
    %649 = vmatpush.msra.mxu0 %v648
    %v650 = vand.u32 %v391, 4294901760
    %651 = vmatpush.msra.mxu0 %v650
    %v652 = vand.u32 %v390, 4294901760
    %653 = vmatpush.msra.mxu0 %v652
    %v654 = vand.u32 %v389, 4294901760
    %655 = vmatpush.msra.mxu0 %v654
    %v656 = vand.u32 %v388, 4294901760
    %657 = vmatpush.msra.mxu0 %v656
    %v658 = vand.u32 %v387, 4294901760
    %659 = vmatpush.msra.mxu0 %v658
    %v660 = vand.u32 %v400, 4294901760
    %661 = vmatmul.f32.gmra.mxu0 %v660
    %v662 = vpop.f32.mrf.mxu0
    %v663 = vadd.f32 %v632, %v662
    %664 = vdwg.mxu0
    %vm665 = vcmask 319488
    %v666 = vsel %vm665, %v663, -inf
    %667 = vmax.xlane.f32.xlu0 %v666
    %v668 = vpop.xlane.xlu0 %667
    %v669 = vsub.f32 %v663, %v668
    %v670 = vmul.f32 %v669, 1.442695
    %v671 = vpow.pop %v670
    %v672 = vld [vmem:[%s5] sm:$0xff]
    %v673 = vld [vmem:[%s5 + $0x8] sm:$0xff]
    %v674 = vld [vmem:[%s5 + $0x10] sm:$0xff]
    %v675 = vld [vmem:[%s5 + $0x18] sm:$0xff]
    %v676 = vld [vmem:[%s5 + $0x20] sm:$0xff]
    %vm677 = vcmask 326656
    %v679 = vsel %vm677, %v671, 0
    %681 = vmatpush.msra.mxu0 0.0
    %682 = vmatpush.msra.mxu0 0.0
    %683 = vmatpush.msra.mxu0 0.0
    %684 = vmatpush.msra.mxu0 0.0
    %685 = vmatpush.msra.mxu0 0.0
    %686 = vmatpush.msra.mxu0 0.0
    %687 = vmatpush.msra.mxu0 0.0
    %688 = vmatpush.msra.mxu0 0.0
    %689 = vmatpush.msra.mxu0 0.0
    %690 = vmatpush.msra.mxu0 0.0
    %691 = vmatpush.msra.mxu0 0.0
    %v692 = vand.u32 %v676, 4294901760
    %693 = vmatpush.msra.mxu0 %v692
    %v694 = vand.u32 %v675, 4294901760
    %695 = vmatpush.msra.mxu0 %v694
    %v696 = vand.u32 %v674, 4294901760
    %697 = vmatpush.msra.mxu0 %v696
    %v698 = vand.u32 %v673, 4294901760
    %699 = vmatpush.msra.mxu0 %v698
    %v700 = vand.u32 %v672, 4294901760
    %701 = vmatpush.msra.mxu0 %v700
    %v702 = vand.u32 %v679, 4294901760
    %v703 = vsub.f32 %v679, %v702
    %v704 = vand.u32 %v703, 4294901760
    %v705 = vsub.f32 %v703, %v704
    %v706 = vand.u32 %v705, 4294901760
    %707 = vmatmul.f32.gmra.mxu0 %v706
    %v708 = vpop.f32.mrf.mxu0
    %v709 = vadd.f32 0.0, %v708
    %710 = vdwg.mxu0
    %711 = vmatpush.msra.mxu0 0.0
    %712 = vmatpush.msra.mxu0 0.0
    %713 = vmatpush.msra.mxu0 0.0
    %714 = vmatpush.msra.mxu0 0.0
    %715 = vmatpush.msra.mxu0 0.0
    %716 = vmatpush.msra.mxu0 0.0
    %717 = vmatpush.msra.mxu0 0.0
    %718 = vmatpush.msra.mxu0 0.0
    %719 = vmatpush.msra.mxu0 0.0
    %720 = vmatpush.msra.mxu0 0.0
    %721 = vmatpush.msra.mxu0 0.0
    %v722 = vand.u32 %v676, 4294901760
    %v723 = vsub.f32 %v676, %v722
    %v724 = vand.u32 %v723, 4294901760
    %v725 = vsub.f32 %v723, %v724
    %v726 = vand.u32 %v725, 4294901760
    %727 = vmatpush.msra.mxu0 %v726
    %v728 = vand.u32 %v675, 4294901760
    %v729 = vsub.f32 %v675, %v728
    %v730 = vand.u32 %v729, 4294901760
    %v731 = vsub.f32 %v729, %v730
    %v732 = vand.u32 %v731, 4294901760
    %733 = vmatpush.msra.mxu0 %v732
    %v734 = vand.u32 %v674, 4294901760
    %v735 = vsub.f32 %v674, %v734
    %v736 = vand.u32 %v735, 4294901760
    %v737 = vsub.f32 %v735, %v736
    %v738 = vand.u32 %v737, 4294901760
    %739 = vmatpush.msra.mxu0 %v738
    %v740 = vand.u32 %v673, 4294901760
    %v741 = vsub.f32 %v673, %v740
    %v742 = vand.u32 %v741, 4294901760
    %v743 = vsub.f32 %v741, %v742
    %v744 = vand.u32 %v743, 4294901760
    %745 = vmatpush.msra.mxu0 %v744
    %v746 = vand.u32 %v672, 4294901760
    %v747 = vsub.f32 %v672, %v746
    %v748 = vand.u32 %v747, 4294901760
    %v749 = vsub.f32 %v747, %v748
    %v750 = vand.u32 %v749, 4294901760
    %751 = vmatpush.msra.mxu0 %v750
    %v752 = vand.u32 %v679, 4294901760
    %753 = vmatmul.f32.gmra.mxu0 %v752
    %v754 = vpop.f32.mrf.mxu0
    %v755 = vadd.f32 %v709, %v754
    %756 = vdwg.mxu0
    %757 = vmatpush.msra.mxu0 0.0
    %758 = vmatpush.msra.mxu0 0.0
    %759 = vmatpush.msra.mxu0 0.0
    %760 = vmatpush.msra.mxu0 0.0
    %761 = vmatpush.msra.mxu0 0.0
    %762 = vmatpush.msra.mxu0 0.0
    %763 = vmatpush.msra.mxu0 0.0
    %764 = vmatpush.msra.mxu0 0.0
    %765 = vmatpush.msra.mxu0 0.0
    %766 = vmatpush.msra.mxu0 0.0
    %767 = vmatpush.msra.mxu0 0.0
    %v768 = vand.u32 %v676, 4294901760
    %v769 = vsub.f32 %v676, %v768
    %770 = vmatpush.msra.mxu0 %v769
    %v771 = vand.u32 %v675, 4294901760
    %v772 = vsub.f32 %v675, %v771
    %773 = vmatpush.msra.mxu0 %v772
    %v774 = vand.u32 %v674, 4294901760
    %v775 = vsub.f32 %v674, %v774
    %776 = vmatpush.msra.mxu0 %v775
    %v777 = vand.u32 %v673, 4294901760
    %v778 = vsub.f32 %v673, %v777
    %779 = vmatpush.msra.mxu0 %v778
    %v780 = vand.u32 %v672, 4294901760
    %v781 = vsub.f32 %v672, %v780
    %782 = vmatpush.msra.mxu0 %v781
    %v783 = vand.u32 %v679, 4294901760
    %v784 = vsub.f32 %v679, %v783
    %785 = vmatmul.f32.gmra.mxu0 %v784
    %v786 = vpop.f32.mrf.mxu0
    %v787 = vadd.f32 %v755, %v786
    %788 = vdwg.mxu0
    %789 = vmatpush.msra.mxu0 0.0
    %790 = vmatpush.msra.mxu0 0.0
    %791 = vmatpush.msra.mxu0 0.0
    %792 = vmatpush.msra.mxu0 0.0
    %793 = vmatpush.msra.mxu0 0.0
    %794 = vmatpush.msra.mxu0 0.0
    %795 = vmatpush.msra.mxu0 0.0
    %796 = vmatpush.msra.mxu0 0.0
    %797 = vmatpush.msra.mxu0 0.0
    %798 = vmatpush.msra.mxu0 0.0
    %799 = vmatpush.msra.mxu0 0.0
    %v800 = vand.u32 %v676, 4294901760
    %801 = vmatpush.msra.mxu0 %v800
    %v802 = vand.u32 %v675, 4294901760
    %803 = vmatpush.msra.mxu0 %v802
    %v804 = vand.u32 %v674, 4294901760
    %805 = vmatpush.msra.mxu0 %v804
    %v806 = vand.u32 %v673, 4294901760
    %807 = vmatpush.msra.mxu0 %v806
    %v808 = vand.u32 %v672, 4294901760
    %809 = vmatpush.msra.mxu0 %v808
    %v810 = vand.u32 %v679, 4294901760
    %v811 = vsub.f32 %v679, %v810
    %v812 = vand.u32 %v811, 4294901760
    %813 = vmatmul.f32.gmra.mxu0 %v812
    %v814 = vpop.f32.mrf.mxu0
    %v815 = vadd.f32 %v787, %v814
    %816 = vdwg.mxu0
    %817 = vmatpush.msra.mxu0 0.0
    %818 = vmatpush.msra.mxu0 0.0
    %819 = vmatpush.msra.mxu0 0.0
    %820 = vmatpush.msra.mxu0 0.0
    %821 = vmatpush.msra.mxu0 0.0
    %822 = vmatpush.msra.mxu0 0.0
    %823 = vmatpush.msra.mxu0 0.0
    %824 = vmatpush.msra.mxu0 0.0
    %825 = vmatpush.msra.mxu0 0.0
    %826 = vmatpush.msra.mxu0 0.0
    %827 = vmatpush.msra.mxu0 0.0
    %v828 = vand.u32 %v676, 4294901760
    %v829 = vsub.f32 %v676, %v828
    %v830 = vand.u32 %v829, 4294901760
    %831 = vmatpush.msra.mxu0 %v830
    %v832 = vand.u32 %v675, 4294901760
    %v833 = vsub.f32 %v675, %v832
    %v834 = vand.u32 %v833, 4294901760
    %835 = vmatpush.msra.mxu0 %v834
    %v836 = vand.u32 %v674, 4294901760
    %v837 = vsub.f32 %v674, %v836
    %v838 = vand.u32 %v837, 4294901760
    %839 = vmatpush.msra.mxu0 %v838
    %v840 = vand.u32 %v673, 4294901760
    %v841 = vsub.f32 %v673, %v840
    %v842 = vand.u32 %v841, 4294901760
    %843 = vmatpush.msra.mxu0 %v842
    %v844 = vand.u32 %v672, 4294901760
    %v845 = vsub.f32 %v672, %v844
    %v846 = vand.u32 %v845, 4294901760
    %847 = vmatpush.msra.mxu0 %v846
    %v848 = vand.u32 %v679, 4294901760
    %849 = vmatmul.f32.gmra.mxu0 %v848
    %v850 = vpop.f32.mrf.mxu0
    %v851 = vadd.f32 %v815, %v850
    %852 = vdwg.mxu0
    %853 = vmatpush.msra.mxu0 0.0
    %854 = vmatpush.msra.mxu0 0.0
    %855 = vmatpush.msra.mxu0 0.0
    %856 = vmatpush.msra.mxu0 0.0
    %857 = vmatpush.msra.mxu0 0.0
    %858 = vmatpush.msra.mxu0 0.0
    %859 = vmatpush.msra.mxu0 0.0
    %860 = vmatpush.msra.mxu0 0.0
    %861 = vmatpush.msra.mxu0 0.0
    %862 = vmatpush.msra.mxu0 0.0
    %863 = vmatpush.msra.mxu0 0.0
    %v864 = vand.u32 %v676, 4294901760
    %865 = vmatpush.msra.mxu0 %v864
    %v866 = vand.u32 %v675, 4294901760
    %867 = vmatpush.msra.mxu0 %v866
    %v868 = vand.u32 %v674, 4294901760
    %869 = vmatpush.msra.mxu0 %v868
    %v870 = vand.u32 %v673, 4294901760
    %871 = vmatpush.msra.mxu0 %v870
    %v872 = vand.u32 %v672, 4294901760
    %873 = vmatpush.msra.mxu0 %v872
    %v874 = vand.u32 %v679, 4294901760
    %875 = vmatmul.f32.gmra.mxu0 %v874
    %v876 = vpop.f32.mrf.mxu0
    %v877 = vadd.f32 %v851, %v876
    %878 = vdwg.mxu0
    %v879 = vlog2.pop %v877
    %v880 = vmul.f32 %v879, 0.6931472
    %v881 = vsub.f32 %v669, %v880
    %882 = vst.msk [vmem:[#allocation2] sm:$0x1] %vm665, %v881
    // Predicated region
    $region26: #{tpu_custom_call.1} parent=1 // pred_check
      _
    $region27: #{tpu_custom_call.1} parent=1 // pred_check_branch
      %884 = sbr.rel (0) target = $region29
    $region28: #{tpu_custom_call.1} parent=1 // pred_region
      %886 = vsyncadd [#allocation3], 0
      %s888 = sshll.u32 [#allocation2], 4
      %s889 = int_to_ptr.vmem [resolvable:$true] %s888
      %s890 = sshll.u32 %s6, 4
      %s891 = int_to_ptr.hbm [resolvable:$true] %s890
      %893 = dma.vmem_to_hbm [thread:$0]  %s889, 16, %s891, [#allocation3]
    $region29: #{tpu_custom_call.1} parent=1 // pred_fallthru
      _
    // Predicated region
    $region30: #{tpu_custom_call.1} parent=1 // pred_check
      _
    $region31: #{tpu_custom_call.1} parent=1 // pred_check_branch
      %895 = sbr.rel (0) target = $region33
    $region32: #{tpu_custom_call.1} parent=1 // pred_region
      %897 = dma.done [#allocation3], 16
    $region33: #{tpu_custom_call.1} parent=1 // pred_fallthru
      _
    %898 = vsyncpa [#allocation3], 1

</llo_original>
